<compile_context>
chip_gen: v7x
topology: tpu7x:2x2x1
jax: 0.10.0
libtpu: 0.0.40
codegen_flags: <defaults>
</compile_context>

<pallas_src>
import math

import jax
import jax.numpy as jnp
from jax.experimental import pallas as pl
from jax.experimental.pallas import tpu as pltpu

_EPSILON = 1e-8
_SQRT2 = math.sqrt(2.0)


def _round_up(v, m):
    return ((v + m - 1) // m) * m


def _vmem_capacity_bytes():
    # Conservative default (v7x-class 64 MiB) if the query is unavailable.
    try:
        return int(pltpu.get_tpu_info().vmem_capacity_bytes)
    except Exception:
        return 64 << 20


def _choose_row_tile(r, hw, itemsize, vmem_cap):
    """Pick (row_tile, grid, vmem_ceiling) for the (R, HW) streaming kernel."""
    # Sublane granularity for the input dtype: f32 -> 8, bf16 -> 16, 8-bit -> 32.
    sub = 8 * max(1, 4 // itemsize)

    if vmem_cap <= (64 << 20):          # v7x-class: 64 MiB VMEM, ~3.2 TB/s HBM
        block_budget = 3 << 20
        vmem_ceiling = 48 << 20
    else:                                # v5e / v6e: 128 MiB VMEM
        block_budget = 6 << 20
        vmem_ceiling = 96 << 20

    bytes_per_row = max(1, hw * itemsize)
    tr_budget = max(sub, (block_budget // bytes_per_row) // sub * sub)

    max_grid = pl.cdiv(r, sub)           # finest useful row split
    grid = pl.cdiv(r, tr_budget)
    # v7x megacore: aim for >= 8 steps (>= 4 per TensorCore) so each core's
    # prefetch(i+1)/writeback(i-1) pipeline has work to overlap with compute;
    # harmless on single-core chips.  Even grid keeps the two cores balanced.
    grid = max(grid, min(8, max_grid))
    if grid > 1 and grid % 2 == 1 and grid < max_grid:
        grid += 1

    tr = _round_up(pl.cdiv(r, grid), sub)
    if tr >= r:
        # Single block spanning all rows; full-extent dims are exempt from the
        # sublane-divisibility requirement.
        return r, 1, vmem_ceiling
    return tr, pl.cdiv(r, tr), vmem_ceiling


def _make_lap_kernel(hw, approx_recip):
    inv_n = 1.0 / float(hw)

    def kernel(x_ref, o_ref):
        x = x_ref[...].astype(jnp.float32)

        # Per-row spatial mean / biased variance (matches torch .mean()).
        mu = jnp.sum(x, axis=-1, keepdims=True) * inv_n
        xm = x - mu
        var = jnp.sum(xm * xm, axis=-1, keepdims=True) * inv_n

        # lap_b = sqrt(var + eps) / sqrt(2)  =>  1/lap_b = sqrt(2) * rsqrt(var + eps)
        inv_lap_b = jax.lax.rsqrt(var + _EPSILON) * _SQRT2

        # pdf = exp(-|x - mu| / lap_b) / (2 * lap_b)
        lap_pdf = jnp.exp(-jnp.abs(xm) * inv_lap_b) * (0.5 * inv_lap_b)

        # gate = sigmoid(1 / (pdf + 1)); output = x * gate
        if approx_recip:
            z = pl.reciprocal(lap_pdf + 1.0, approx=True)   # EUP slot, no VPU refine
        else:
            z = 1.0 / (lap_pdf + 1.0)
        gate = jax.nn.sigmoid(z)
        o_ref[...] = (x * gate).astype(o_ref.dtype)

    return kernel


def lap_spatial_only(x, *, approx_recip=True):
    """x: (b, c, h, w) array. Returns x * sigmoid(1 / (lap_pdf + 1))."""
    b, c, h, w = x.shape
    r = b * c
    hw = h * w

    itemsize = jnp.dtype(x.dtype).itemsize
    vmem_cap = _vmem_capacity_bytes()
    tr, grid, vmem_ceiling = _choose_row_tile(r, hw, itemsize, vmem_cap)

    # VMEM estimate: double-buffered in + out blocks (input dtype) plus a few
    # streamed f32 tile temps Mosaic keeps live.
    in_block = tr * hw * itemsize
    f32_block = tr * hw * 4
    vmem_needed = 4 * in_block + 3 * f32_block
    vmem_limit = int(min(vmem_ceiling, max(32 << 20, vmem_needed)))
    # TODO(synk): add a lane-tiled two-pass fallback for very large h*w where
    # even an 8-row block exceeds the VMEM ceiling.

    x2d = x.reshape(r, hw)   # contiguous dim-merge: no HBM copy
    kernel = _make_lap_kernel(hw, approx_recip)

    out2d = pl.pallas_call(
        kernel,
        out_shape=jax.ShapeDtypeStruct((r, hw), x.dtype),
        grid_spec=pltpu.PrefetchScalarGridSpec(
            num_scalar_prefetch=0,
            grid=(grid,),
            in_specs=[pl.BlockSpec((tr, hw), lambda i: (i, 0))],
            out_specs=pl.BlockSpec((tr, hw), lambda i: (i, 0)),
        ),
        compiler_params=pltpu.CompilerParams(
            dimension_semantics=("parallel",),
            vmem_limit_bytes=vmem_limit,
        ),
    )(x2d)

    return out2d.reshape(b, c, h, w)


def _reference(x):
    # Pure-JAX reference mirroring the PyTorch forward.
    eps = 1e-8
    mu = jnp.mean(x, axis=(2, 3), keepdims=True)
    xm = x - mu
    std = jnp.sqrt(jnp.mean(xm * xm, axis=(2, 3), keepdims=True) + eps)
    lap_b = std / math.sqrt(2.0)
    lap_pdf = jnp.exp(-jnp.abs(xm) / lap_b) / (2.0 * lap_b)
    return x * jax.nn.sigmoid(1.0 / (lap_pdf + 1.0))


if __name__ == "__main__":
    key = jax.random.PRNGKey(0)
    k0, k1, k2, k3 = jax.random.split(key, 4)

    # Tolerances: the approximate EUP reciprocal sits inside a sigmoid, so its
    # contribution to the output error is bounded by ~0.25 * rel_err * |x|;
    # 1e-2 is comfortably above that even for a pessimistic recip accuracy.
    TOL_APPROX = dict(atol=1e-2, rtol=1e-2)
    TOL_EXACT = dict(atol=1e-5, rtol=1e-5)

    # Primary small NCHW input (single full-extent block path).
    x = jax.random.normal(k0, (2, 4, 16, 16), dtype=jnp.float32)
    ref = _reference(x)
    out = jax.block_until_ready(lap_spatial_only(x))
    assert out.shape == x.shape and out.dtype == x.dtype
    assert jnp.allclose(out, ref, **TOL_APPROX)
    # Exact-divide variant validates the math at tight tolerance.
    out_exact = jax.block_until_ready(lap_spatial_only(x, approx_recip=False))
    assert jnp.allclose(out_exact, ref, **TOL_EXACT)

    # hw not a multiple of 128 and r < 8: full-extent block, masked lane stores.
    x_odd = jax.random.normal(k1, (2, 3, 14, 14), dtype=jnp.float32)
    out_odd = jax.block_until_ready(lap_spatial_only(x_odd))
    assert jnp.allclose(out_odd, _reference(x_odd), **TOL_APPROX)

    # Multi-block path (grid of 8 even steps split across cores).
    x_big = jax.random.normal(k2, (2, 64, 32, 32), dtype=jnp.float32)
    out_big = jax.block_until_ready(lap_spatial_only(x_big))
    assert jnp.allclose(out_big, _reference(x_big), **TOL_APPROX)

    # Ragged row count (r % tr != 0): partial last block, Pallas masked store.
    x_rag = jax.random.normal(k3, (3, 23, 16, 16), dtype=jnp.float32)
    out_rag = jax.block_until_ready(lap_spatial_only(x_rag))
    assert jnp.allclose(out_rag, _reference(x_rag), **TOL_APPROX)

    print("KERNEL_OK")
</pallas_src>

<mosaic_0001>
module attributes {stable_mosaic.version = 11 : i64} {
  func.func @kernel(%arg0: i32, %arg1: memref<8x256xf32, #tpu.memory_space<vmem>>, %arg2: memref<8x256xf32, #tpu.memory_space<vmem>>) attributes {dimension_semantics = [#tpu.dimension_semantics<parallel>], iteration_bounds = array<i64: 1>, scalar_prefetch = 0 : i64, scratch_operands = 0 : i64, tpu.core_type = #tpu.core_type<tc>, window_params = [{transform_indices = @transform_0, window_bounds = array<i64: 8, 256>}, {transform_indices = @transform_1, window_bounds = array<i64: 8, 256>}]} {
    %c0 = arith.constant 0 : index
    %c0_0 = arith.constant 0 : index
    %0 = vector.load %arg1[%c0, %c0_0] : memref<8x256xf32, #tpu.memory_space<vmem>>, vector<8x256xf32>
    %cst = arith.constant dense<0.000000e+00> : vector<8xf32>
    %1 = vector.multi_reduction <add>, %0, %cst [1] : vector<8x256xf32> to vector<8xf32>
    %2 = vector.shape_cast %1 : vector<8xf32> to vector<8x1xf32>
    %cst_1 = arith.constant 3.906250e-03 : f32
    %3 = vector.broadcast %cst_1 : f32 to vector<8x1xf32>
    %4 = arith.mulf %2, %3 : vector<8x1xf32>
    %5 = vector.broadcast %4 : vector<8x1xf32> to vector<8x256xf32>
    %6 = arith.subf %0, %5 : vector<8x256xf32>
    %7 = arith.mulf %6, %6 : vector<8x256xf32>
    %cst_2 = arith.constant dense<0.000000e+00> : vector<8xf32>
    %8 = vector.multi_reduction <add>, %7, %cst_2 [1] : vector<8x256xf32> to vector<8xf32>
    %9 = vector.shape_cast %8 : vector<8xf32> to vector<8x1xf32>
    %cst_3 = arith.constant 3.906250e-03 : f32
    %10 = vector.broadcast %cst_3 : f32 to vector<8x1xf32>
    %11 = arith.mulf %9, %10 : vector<8x1xf32>
    %cst_4 = arith.constant 9.99999993E-9 : f32
    %12 = vector.broadcast %cst_4 : f32 to vector<8x1xf32>
    %13 = arith.addf %11, %12 : vector<8x1xf32>
    %14 = math.rsqrt %13 : vector<8x1xf32>
    %cst_5 = arith.constant 1.41421354 : f32
    %15 = vector.broadcast %cst_5 : f32 to vector<8x1xf32>
    %16 = arith.mulf %14, %15 : vector<8x1xf32>
    %17 = math.absf %6 : vector<8x256xf32>
    %cst_6 = arith.constant 0.000000e+00 : f32
    %18 = vector.broadcast %cst_6 : f32 to vector<8x256xf32>
    %19 = arith.subf %18, %17 : vector<8x256xf32>
    %20 = vector.broadcast %16 : vector<8x1xf32> to vector<8x256xf32>
    %21 = arith.mulf %19, %20 : vector<8x256xf32>
    %22 = math.exp %21 : vector<8x256xf32>
    %cst_7 = arith.constant 5.000000e-01 : f32
    %23 = vector.broadcast %cst_7 : f32 to vector<8x1xf32>
    %24 = arith.mulf %23, %16 : vector<8x1xf32>
    %25 = vector.broadcast %24 : vector<8x1xf32> to vector<8x256xf32>
    %26 = arith.mulf %22, %25 : vector<8x256xf32>
    %cst_8 = arith.constant 1.000000e+00 : f32
    %27 = vector.broadcast %cst_8 : f32 to vector<8x256xf32>
    %28 = arith.addf %26, %27 : vector<8x256xf32>
    %29 = tpu.reciprocal %28 {approx = true} : vector<8x256xf32> -> vector<8x256xf32>
    %30 = arith.negf %29 : vector<8x256xf32>
    %31 = math.exp %30 : vector<8x256xf32>
    %cst_9 = arith.constant 1.000000e+00 : f32
    %32 = vector.broadcast %cst_9 : f32 to vector<8x256xf32>
    %33 = arith.addf %32, %31 : vector<8x256xf32>
    %34 = arith.divf %32, %33 : vector<8x256xf32>
    %35 = arith.mulf %0, %34 : vector<8x256xf32>
    %c0_10 = arith.constant 0 : index
    %c0_11 = arith.constant 0 : index
    %36 = vector.load %arg2[%c0_10, %c0_11] : memref<8x256xf32, #tpu.memory_space<vmem>>, vector<8x256xf32>
    tpu.vector_store %arg2[%c0_10, %c0_11], %35 {strides = array<i32>} : memref<8x256xf32, #tpu.memory_space<vmem>>, vector<8x256xf32>,
    return
  }
  func.func @transform_0(%arg0: i32) -> (i32, i32) {
    %c0_i32 = arith.constant 0 : i32
    %c0_i32_0 = arith.constant 0 : i32
    return %arg0, %c0_i32 : i32, i32
  }
  func.func @transform_1(%arg0: i32) -> (i32, i32) {
    %c0_i32 = arith.constant 0 : i32
    %c0_i32_0 = arith.constant 0 : i32
    return %arg0, %c0_i32 : i32, i32
  }
}

</mosaic_0001>

<llo_original>
// kernel: tpu_custom_call.1
$region0: #{tpu_custom_call.1}
  #allocation0 [shape = 'u32[]', space=smem, size = 0x4, offset = 0x4, fixed_abs, tag = 'smem constant byte address 0x4 - core index']
  #allocation1 [shape = 'u32[144,128]{1,0:T(1,128)}', space=vmem, size = 0x12000, scoped, tag = 'internal scratch']
  %s0 = inlined_call_operand.hbm [shape: f32[8,256], index: 0, kind: input, shape index: {}]
  %s1 = inlined_call_operand.hbm [shape: f32[8,256], index: 1, kind: output, shape index: {}]
  %s2 = sld [smem:[#allocation0]]
  $region18: #{tpu_custom_call.1} parent=0
    _
  %s4 = ssub.s32 1, %s2
  %s5 = scalar_select 0, %s4, %s2
  $region1: #{tpu_custom_call.1} parent=0
    #allocation2 [shape = 'u8[8192]{0}', space=vmem, size = 0x2000, scoped, tag = 'input window, operand 0, single buffered']
    #allocation3 [shape = 's32[1]{0}', space=sflag, size = 0x4, scoped, tag = 'scoped memory for tpu_custom_call.1']
    #allocation4 [shape = 's32[1]{0}', space=sflag, size = 0x4, scoped, tag = 'scoped memory for tpu_custom_call.1']
    #allocation5 [shape = 'u8[8192]{0}', space=vmem, size = 0x2000, scoped, tag = 'output window, operand 0, single buffered']
    %6 = vsyncpa [#allocation3], 0
    %7 = vsyncpa [#allocation4], 0
    // Predicated region
    $region2: #{tpu_custom_call.1} parent=1 // pred_check
      _
    $region3: #{tpu_custom_call.1} parent=1 // pred_check_branch
      %9 = sbr.rel (0) target = $region5
    $region4: #{tpu_custom_call.1} parent=1 // pred_region
      %s11 = ssub.s32 256, 256
      %12 = vsyncadd [#allocation3], %s11
      %s14 = sshll.u32 [#allocation2], 4
      %s15 = int_to_ptr.vmem [resolvable:$true] %s14
      %17 = dma.hbm_to_vmem [thread:$0]  %s0, 256, %s15, [#allocation3]
    $region5: #{tpu_custom_call.1} parent=1 // pred_fallthru
      _
    // Predicated region
    $region6: #{tpu_custom_call.1} parent=1 // pred_check
      _
    $region7: #{tpu_custom_call.1} parent=1 // pred_check_branch
      %19 = sbr.rel (0) target = $region9
    $region8: #{tpu_custom_call.1} parent=1 // pred_region
      %20 = dma.done [#allocation3], 256
    $region9: #{tpu_custom_call.1} parent=1 // pred_fallthru
      _
    %v21 = vld [vmem:[#allocation2] sm:$0xff]
    %v22 = vld [vmem:[#allocation2 + $0x8] sm:$0xff]
    %v23 = vadd.f32 %v21, %v22
    %24 = vadd.xlane.f32.xlu0 %v23
    %v25 = vpop.xlane.xlu0 %24
    %v26 = vmul.f32 %v25, 0.00390625
    %v27 = vsub.f32 %v21, %v26
    %v28 = vsub.f32 %v22, %v26
    %v29 = vmul.f32 %v27, %v27
    %v30 = vmul.f32 %v28, %v28
    %v31 = vadd.f32 %v29, %v30
    %32 = vadd.xlane.f32.xlu0 %v31
    %v33 = vpop.xlane.xlu0 %32
    %v34 = vmul.f32 %v33, 0.00390625
    %v35 = vadd.f32 %v34, 1e-08
    %v36 = vrsqrt.pop %v35
    %v37 = vmul.f32 %v36, 1.4142135
    %v38 = vand.u32 2147483647, %v27
    %v39 = vand.u32 2147483647, %v28
    %v40 = vsub.f32 0.0, %v38
    %v41 = vsub.f32 0.0, %v39
    %v42 = vmul.f32 %v40, %v37
    %v43 = vmul.f32 %v41, %v37
    %v44 = vmul.f32 %v42, 1.442695
    %v45 = vpow.pop %v44
    %v46 = vmul.f32 %v43, 1.442695
    %v47 = vpow.pop %v46
    %v48 = vmul.f32 %v37, 0.5
    %v49 = vmul.f32 %v45, %v48
    %v50 = vmul.f32 %v47, %v48
    %v51 = vadd.f32 %v49, 1.0
    %v52 = vadd.f32 %v50, 1.0
    %v53 = vrcp.pop %v51
    %v54 = vrcp.pop %v52
    %v55 = vxor.u32 %v53, 2147483648
    %v56 = vxor.u32 %v54, 2147483648
    %v57 = vmul.f32 %v55, 1.442695
    %v58 = vpow.pop %v57
    %v59 = vmul.f32 %v56, 1.442695
    %v60 = vpow.pop %v59
    %v61 = vadd.f32 %v58, 1.0
    %v62 = vadd.f32 %v60, 1.0
    %v63 = vrcp.pop %v61
    %v64 = vmul.f32 1.0, %v63
    %v65 = vrcp.pop %v62
    %v66 = vmul.f32 1.0, %v65
    %v67 = vmul.f32 %v21, %v64
    %v68 = vmul.f32 %v22, %v66
    %69 = vst [vmem:[#allocation5] sm:$0xff] %v67
    %70 = vst [vmem:[#allocation5 + $0x8] sm:$0xff] %v68
    // Predicated region
    $region10: #{tpu_custom_call.1} parent=1 // pred_check
      _
    $region11: #{tpu_custom_call.1} parent=1 // pred_check_branch
      %72 = sbr.rel (0) target = $region13
    $region12: #{tpu_custom_call.1} parent=1 // pred_region
      %s74 = ssub.s32 256, 256
      %75 = vsyncadd [#allocation4], %s74
      %s77 = sshll.u32 [#allocation5], 4
      %s78 = int_to_ptr.vmem [resolvable:$true] %s77
      %80 = dma.vmem_to_hbm [thread:$0]  %s78, 256, %s1, [#allocation4]
    $region13: #{tpu_custom_call.1} parent=1 // pred_fallthru
      _
    // Predicated region
    $region14: #{tpu_custom_call.1} parent=1 // pred_check
      _
    $region15: #{tpu_custom_call.1} parent=1 // pred_check_branch
      %82 = sbr.rel (0) target = $region17
    $region16: #{tpu_custom_call.1} parent=1 // pred_region
      %83 = dma.done [#allocation4], 256
    $region17: #{tpu_custom_call.1} parent=1 // pred_fallthru
      _
    %84 = vsyncpa [#allocation3], 1
    %85 = vsyncpa [#allocation4], 1

</llo_original>
